<compile_context>
chip_gen: v7x
topology: tpu7x:2x2x1
jax: 0.10.0
libtpu: 0.0.40
codegen_flags: <defaults>
</compile_context>

<pallas_src>
import functools
import math

import jax
import jax.numpy as jnp
from jax.experimental import pallas as pl
from jax.experimental.pallas import tpu as pltpu


def timestep_embedder_kernel(t_ref, w1_ref, b_ref, w2_ref, out_ref, *,
                             half, freq_scale):
    # t_ref:   (Np, 1)          f32
    # w1_ref:  (2*half, H)      bf16
    # b_ref:   (2, H)           f32   row 0 = bias1, row 1 = bias2
    # w2_ref:  (H, H)           bf16
    # out_ref: (Np, H)          f32
    dim2 = 2 * half

    # Build [freqs, freqs] and the phase row in-kernel (no extra input DMAs).
    lane = jax.lax.broadcasted_iota(jnp.int32, (1, dim2), 1)
    is_cos = lane < half
    fidx = jnp.where(is_cos, lane, lane - half).astype(jnp.float32)
    freqs = jnp.exp(fidx * freq_scale)                       # (1, 2*half)
    phase = jnp.where(is_cos, 0.0, -math.pi / 2.0).astype(jnp.float32)

    t = t_ref[...]                                           # (Np, 1)
    emb = jnp.cos(t * freqs + phase)                         # == [cos(tf), sin(tf)]

    # Linear 1 (bf16 MXU inputs, f32 accumulate) + SiLU in f32.
    h = jnp.dot(emb.astype(jnp.bfloat16), w1_ref[...],
                preferred_element_type=jnp.float32)
    h = h + b_ref[0:1, :]
    h = h * jax.nn.sigmoid(h)                                # SiLU

    # Linear 2 (bf16 MXU inputs, f32 accumulate).
    out = jnp.dot(h.astype(jnp.bfloat16), w2_ref[...],
                  preferred_element_type=jnp.float32)
    out_ref[...] = out + b_ref[1:2, :]


def _round_up(x, m):
    return ((x + m - 1) // m) * m


def prepare_params(params):
    """One-time preparation: bf16 weights, biases packed into one (2, H) f32
    array. Do this ONCE and reuse the result across all diffusion steps."""
    w1, b1, w2, b2 = params
    hidden = w2.shape[1]
    w1b = w1.astype(jnp.bfloat16)
    w2b = w2.astype(jnp.bfloat16)
    biases = jnp.concatenate(
        [b1.astype(jnp.float32).reshape(1, hidden),
         b2.astype(jnp.float32).reshape(1, hidden)], axis=0)   # (2, H)
    return (w1b, biases, w2b)


def timestep_embedder(t, prepared_params, frequency_embedding_size=256,
                      max_period=10000.0):
    """t: (N,) float array of timesteps. Returns (N, hidden_size) f32.

    `prepared_params` must come from prepare_params() (done once, not per call).
    """
    if frequency_embedding_size % 2:
        raise ValueError("frequency_embedding_size must be even "
                         "(odd zero-pad branch not implemented)")
    w1b, biases, w2b = prepared_params
    n = t.shape[0]
    freq_dim = w1b.shape[0]
    hidden = w2b.shape[1]
    assert freq_dim == frequency_embedding_size
    half = frequency_embedding_size // 2
    freq_scale = -math.log(max_period) / float(half)

    # Sublane-align the (tiny) timestep column; hidden dim stays unpadded
    # (Mosaic's internal tiling handles layout; no inflated weight HBM bytes).
    n_pad = _round_up(max(n, 8), 8)
    t_f32 = t.astype(jnp.float32)
    if n_pad != n:
        t2d = jnp.zeros((n_pad, 1), jnp.float32).at[:n, 0].set(t_f32)
    else:
        t2d = t_f32.reshape(n_pad, 1)

    # HBM-touching bytes only (inputs + output); VMEM intermediates excluded.
    hbm_bytes = (n_pad * 4                      # t
                 + freq_dim * hidden * 2        # w1 bf16
                 + 2 * hidden * 4               # packed biases
                 + hidden * hidden * 2          # w2 bf16
                 + n_pad * hidden * 4)          # out
    scratch_bytes = (n_pad * freq_dim * 6       # emb f32 + bf16 copy
                     + 3 * n_pad * hidden * 4)  # h f32 + casts + out staging

    # Cap the scoped-VMEM request at physical VMEM (64 MiB/TC on v7x).
    try:
        phys_vmem = int(pltpu.get_tpu_info().vmem_capacity_bytes)
    except Exception:
        phys_vmem = 64 * 1024 * 1024
    vmem_limit = int(min(phys_vmem,
                         max(4 << 20, 2 * (hbm_bytes + scratch_bytes))))

    cost = pl.CostEstimate(
        flops=2 * n_pad * (freq_dim * hidden + hidden * hidden),
        transcendentals=n_pad * (freq_dim + hidden) + freq_dim,  # cos + sigmoid + exp
        bytes_accessed=int(hbm_bytes),
    )

    vmem = pltpu.MemorySpace.VMEM
    kernel = functools.partial(timestep_embedder_kernel,
                               half=half, freq_scale=freq_scale)
    out_pad = pl.pallas_call(
        kernel,
        out_shape=jax.ShapeDtypeStruct((n_pad, hidden), jnp.float32),
        in_specs=[
            pl.BlockSpec(memory_space=vmem),   # t
            pl.BlockSpec(memory_space=vmem),   # w1 (bf16)
            pl.BlockSpec(memory_space=vmem),   # packed biases (f32)
            pl.BlockSpec(memory_space=vmem),   # w2 (bf16)
        ],
        out_specs=pl.BlockSpec(memory_space=vmem),
        compiler_params=pltpu.CompilerParams(vmem_limit_bytes=vmem_limit),
        cost_estimate=cost,
    )(t2d, w1b, biases, w2b)

    return out_pad if n_pad == n else out_pad[:n]


def init_params(key, hidden_size, frequency_embedding_size=256):
    """Deterministic synthetic init. Weights stored as (in, out)."""
    k1, k2, k3, k4 = jax.random.split(key, 4)
    scale1 = 1.0 / math.sqrt(frequency_embedding_size)
    scale2 = 1.0 / math.sqrt(hidden_size)
    w1 = (jax.random.normal(k1, (frequency_embedding_size, hidden_size),
                            jnp.float32) * scale1).astype(jnp.bfloat16)
    b1 = jax.random.normal(k2, (1, hidden_size), jnp.float32) * 0.01
    w2 = (jax.random.normal(k3, (hidden_size, hidden_size),
                            jnp.float32) * scale2).astype(jnp.bfloat16)
    b2 = jax.random.normal(k4, (1, hidden_size), jnp.float32) * 0.01
    return (w1, b1, w2, b2)


def reference(t, params, frequency_embedding_size=256, max_period=10000.0):
    """Pure-JAX reference mirroring the PyTorch forward (f32 math on the
    stored weights)."""
    w1, b1, w2, b2 = params
    half = frequency_embedding_size // 2
    freqs = jnp.exp(-math.log(max_period)
                    * jnp.arange(half, dtype=jnp.float32) / float(half))
    args = t.astype(jnp.float32)[:, None] * freqs[None]
    emb = jnp.concatenate([jnp.cos(args), jnp.sin(args)], axis=-1)
    h = emb @ w1.astype(jnp.float32) + b1.astype(jnp.float32)
    h = h * jax.nn.sigmoid(h)
    return h @ w2.astype(jnp.float32) + b2.astype(jnp.float32)


if __name__ == "__main__":
    key = jax.random.PRNGKey(0)
    k_t, k_p = jax.random.split(key)

    batch = 8
    hidden_size = 32
    freq_dim = 256

    # Fractional timesteps, like diffusion training draws.
    t = jax.random.uniform(k_t, (batch,), jnp.float32, minval=0.0,
                           maxval=1000.0)
    raw_params = init_params(k_p, hidden_size, freq_dim)

    # One-time weight cast / bias packing (reused across all calls).
    prepared = jax.block_until_ready(prepare_params(raw_params))

    out = timestep_embedder(t, prepared, frequency_embedding_size=freq_dim)
    out = jax.block_until_ready(out)

    ref = reference(t, raw_params, frequency_embedding_size=freq_dim)
    assert out.shape == (batch, hidden_size)
    # bf16 MXU inputs with f32 accumulation -> ~1e-3 abs error vs f32 ref.
    assert jnp.allclose(out, ref, rtol=1e-2, atol=1e-2), (
        float(jnp.max(jnp.abs(out - ref))))

    print("KERNEL_OK")
</pallas_src>

<mosaic_0001>
module attributes {stable_mosaic.version = 11 : i64} {
  func.func @timestep_embedder_kernel(%arg0: memref<8x1xf32, #tpu.memory_space<vmem>>, %arg1: memref<256x32xbf16, #tpu.memory_space<vmem>>, %arg2: memref<2x32xf32, #tpu.memory_space<vmem>>, %arg3: memref<32x32xbf16, #tpu.memory_space<vmem>>, %arg4: memref<8x32xf32, #tpu.memory_space<vmem>>) attributes {dimension_semantics = [], scalar_prefetch = 0 : i64, scratch_operands = 0 : i64, tpu.core_type = #tpu.core_type<tc>} {
    %0 = tpu.iota {dimensions = array<i32: 1>} : vector<1x256xi32>
    %c128_i32 = arith.constant 128 : i32
    %1 = vector.broadcast %c128_i32 : i32 to vector<1x256xi32>
    %2 = arith.cmpi slt, %0, %1 : vector<1x256xi32>
    %c128_i32_0 = arith.constant 128 : i32
    %3 = vector.broadcast %c128_i32_0 : i32 to vector<1x256xi32>
    %4 = arith.subi %0, %3 : vector<1x256xi32>
    %5 = arith.select %2, %0, %4 : vector<1x256xi1>, vector<1x256xi32>
    %6 = arith.sitofp %5 : vector<1x256xi32> to vector<1x256xf32>
    %cst = arith.constant -0.0719557852 : f32
    %7 = vector.broadcast %cst : f32 to vector<1x256xf32>
    %8 = arith.mulf %6, %7 : vector<1x256xf32>
    %9 = math.exp %8 : vector<1x256xf32>
    %cst_1 = arith.constant 0.000000e+00 : f32
    %cst_2 = arith.constant -1.57079637 : f32
    %10 = vector.broadcast %cst_1 : f32 to vector<1x256xf32>
    %11 = vector.broadcast %cst_2 : f32 to vector<1x256xf32>
    %12 = arith.select %2, %10, %11 : vector<1x256xi1>, vector<1x256xf32>
    %c0 = arith.constant 0 : index
    %c0_3 = arith.constant 0 : index
    %13 = vector.load %arg0[%c0, %c0_3] : memref<8x1xf32, #tpu.memory_space<vmem>>, vector<8x1xf32>
    %14 = vector.broadcast %13 : vector<8x1xf32> to vector<8x256xf32>
    %15 = vector.broadcast %9 : vector<1x256xf32> to vector<8x256xf32>
    %16 = arith.mulf %14, %15 : vector<8x256xf32>
    %17 = vector.broadcast %12 : vector<1x256xf32> to vector<8x256xf32>
    %18 = arith.addf %16, %17 : vector<8x256xf32>
    %19 = math.cos %18 : vector<8x256xf32>
    %20 = arith.truncf %19 : vector<8x256xf32> to vector<8x256xbf16>
    %c0_4 = arith.constant 0 : index
    %c0_5 = arith.constant 0 : index
    %21 = vector.load %arg1[%c0_4, %c0_5] : memref<256x32xbf16, #tpu.memory_space<vmem>>, vector<256x32xbf16>
    %cst_6 = arith.constant dense<0.000000e+00> : vector<8x32xf32>
    %22 = tpu.matmul %20, %21, %cst_6 {dimension_numbers = #tpu.dot_dimension_numbers<[1], [0], [0], [1], [0, 0, 1, 1], [], []>} : vector<8x256xbf16>, vector<256x32xbf16>, vector<8x32xf32> -> vector<8x32xf32>
    %c0_7 = arith.constant 0 : index
    %c0_8 = arith.constant 0 : index
    %23 = vector.load %arg2[%c0_7, %c0_8] : memref<2x32xf32, #tpu.memory_space<vmem>>, vector<1x32xf32>
    %24 = vector.broadcast %23 : vector<1x32xf32> to vector<8x32xf32>
    %25 = arith.addf %22, %24 : vector<8x32xf32>
    %26 = arith.negf %25 : vector<8x32xf32>
    %27 = math.exp %26 : vector<8x32xf32>
    %cst_9 = arith.constant 1.000000e+00 : f32
    %28 = vector.broadcast %cst_9 : f32 to vector<8x32xf32>
    %29 = arith.addf %28, %27 : vector<8x32xf32>
    %30 = arith.divf %28, %29 : vector<8x32xf32>
    %31 = arith.mulf %25, %30 : vector<8x32xf32>
    %32 = arith.truncf %31 : vector<8x32xf32> to vector<8x32xbf16>
    %c0_10 = arith.constant 0 : index
    %c0_11 = arith.constant 0 : index
    %33 = vector.load %arg3[%c0_10, %c0_11] : memref<32x32xbf16, #tpu.memory_space<vmem>>, vector<32x32xbf16>
    %cst_12 = arith.constant dense<0.000000e+00> : vector<8x32xf32>
    %34 = tpu.matmul %32, %33, %cst_12 {dimension_numbers = #tpu.dot_dimension_numbers<[1], [0], [0], [1], [0, 0, 1, 1], [], []>} : vector<8x32xbf16>, vector<32x32xbf16>, vector<8x32xf32> -> vector<8x32xf32>
    %c1 = arith.constant 1 : index
    %c0_13 = arith.constant 0 : index
    %35 = vector.load %arg2[%c1, %c0_13] : memref<2x32xf32, #tpu.memory_space<vmem>>, vector<1x32xf32>
    %36 = vector.broadcast %35 : vector<1x32xf32> to vector<8x32xf32>
    %37 = arith.addf %34, %36 : vector<8x32xf32>
    %c0_14 = arith.constant 0 : index
    %c0_15 = arith.constant 0 : index
    %38 = vector.load %arg4[%c0_14, %c0_15] : memref<8x32xf32, #tpu.memory_space<vmem>>, vector<8x32xf32>
    tpu.vector_store %arg4[%c0_14, %c0_15], %37 {strides = array<i32>} : memref<8x32xf32, #tpu.memory_space<vmem>>, vector<8x32xf32>,
    return
  }
}

</mosaic_0001>

<llo_original>
// kernel: tpu_custom_call.1
$region0: #{tpu_custom_call.1}
  #allocation0 [shape = 'u32[]', space=smem, size = 0x4, offset = 0x4, fixed_abs, tag = 'smem constant byte address 0x4 - core index']
  #allocation1 [shape = 'u32[144,128]{1,0:T(1,128)}', space=vmem, size = 0x12000, scoped, tag = 'internal scratch']
  %s0 = inlined_call_operand.vmem [shape: f32[8,1], index: 0, kind: input, shape index: {}]
  %s1 = inlined_call_operand.vmem [shape: bf16[256,32], index: 1, kind: input, shape index: {}]
  %s2 = inlined_call_operand.vmem [shape: f32[2,32], index: 2, kind: input, shape index: {}]
  %s3 = inlined_call_operand.vmem [shape: bf16[32,32], index: 3, kind: input, shape index: {}]
  %s4 = inlined_call_operand.hbm [shape: f32[8,32], index: 4, kind: output, shape index: {}]
  %s5 = sld [smem:[#allocation0]]
  $region26: #{tpu_custom_call.1} parent=0
    _
  %s7 = ssub.s32 1, %s5
  %s8 = scalar_select 0, %s7, %s5
  $region1: #{tpu_custom_call.1} parent=0
    #allocation2 [shape = 'u8[4096]{0}', space=vmem, size = 0x1000, scoped, tag = 'output window, operand 0, single buffered']
    #allocation3 [shape = 's32[1]{0}', space=sflag, size = 0x4, scoped, tag = 'scoped memory for tpu_custom_call.1']
    %9 = vsyncpa [#allocation3], 0
    // Predicated region
    $region2: #{tpu_custom_call.1} parent=1 // pred_check
      _
    $region3: #{tpu_custom_call.1} parent=1 // pred_check_branch
      %11 = sbr.rel (0) target = $region5
    $region4: #{tpu_custom_call.1} parent=1 // pred_region
      _
    $region5: #{tpu_custom_call.1} parent=1 // pred_fallthru
      _
    // Predicated region
    $region6: #{tpu_custom_call.1} parent=1 // pred_check
      _
    $region7: #{tpu_custom_call.1} parent=1 // pred_check_branch
      %13 = sbr.rel (0) target = $region9
    $region8: #{tpu_custom_call.1} parent=1 // pred_region
      _
    $region9: #{tpu_custom_call.1} parent=1 // pred_fallthru
      _
    // Predicated region
    $region10: #{tpu_custom_call.1} parent=1 // pred_check
      _
    $region11: #{tpu_custom_call.1} parent=1 // pred_check_branch
      %15 = sbr.rel (0) target = $region13
    $region12: #{tpu_custom_call.1} parent=1 // pred_region
      _
    $region13: #{tpu_custom_call.1} parent=1 // pred_fallthru
      _
    // Predicated region
    $region14: #{tpu_custom_call.1} parent=1 // pred_check
      _
    $region15: #{tpu_custom_call.1} parent=1 // pred_check_branch
      %17 = sbr.rel (0) target = $region17
    $region16: #{tpu_custom_call.1} parent=1 // pred_region
      _
    $region17: #{tpu_custom_call.1} parent=1 // pred_fallthru
      _
    %v19 = vlaneseq
    %v20 = vand.u32 %v19, 127
    %v21 = vadd.s32 %v20, 128
    %vm22 = vcmp.lt.s32.totalorder %v20, 128
    %vm23 = vcmp.lt.s32.totalorder %v21, 128
    %v24 = vsub.s32 %v20, 128
    %v25 = vsel %vm22, %v20, %v24
    %v26 = vsel %vm23, %v21, %v20
    %v27 = vcvt.s32.f32 %v25
    %v28 = vcvt.s32.f32 %v26
    %v29 = vmul.f32 %v27, -0.071955785
    %v30 = vmul.f32 %v28, -0.071955785
    %v31 = vmul.f32 %v29, 1.442695
    %v32 = vpow.pop %v31
    %v33 = vmul.f32 %v30, 1.442695
    %v34 = vpow.pop %v33
    %v35 = vsel %vm22, 0.0, -1.5707964
    %v36 = vsel %vm23, 0.0, -1.5707964
    %v37 = vld [vmem:[%s0] sm:$0xff]
    %39 = vset.pattern.permute.xlu0 0
    %40 = vperm.xlu0 %39, %v37
    %v41 = vpop.permute.xlu0 %40
    %v43 = vmul.f32 %v41, %v32
    %v44 = vmul.f32 %v41, %v34
    %v45 = vadd.f32 %v43, %v35
    %v46 = vadd.f32 %v44, %v36
    %v47 = vand.u32 2147483647, %v45
    %vm48 = vcmp.le.f32.partialorder %v47, 0.7853982
    %vm49 = vcmp.lt.s32.totalorder %v45, 0
    %v50 = vand.u32 %v45, 2139095040
    %v51 = vshrl.u32 %v50, 23
    %v52 = vsub.s32 %v51, 127
    %v53 = vand.u32 2147483647, %v45
    %v54 = vand.u32 %v53, 8388607
    %v55 = vor.u32 %v54, 8388608
    %v56 = vsub.s32 0, %v55
    %v57 = vadd.s32 %v52, 1
    %vm58 = vcmp.gt.s32.totalorder %v57, 0
    %v59 = vsel %vm58, %v57, 0
    %v60 = vshrl.u32 %v59, 5
    %v61 = vand.u32 %v59, 31
    %v62 = vsub.s32 32, %v61
    %v63 = vshrl.u32 683565275, %v62
    %v64 = vshll.u32 683565275, %v61
    %v65 = vshrl.u32 2475754826, %v62
    %v66 = vor.u32 %v64, %v65
    %v67 = vshll.u32 2475754826, %v61
    %v68 = vshrl.u32 2131351028, %v62
    %v69 = vor.u32 %v67, %v68
    %v70 = vshll.u32 2131351028, %v61
    %v71 = vshrl.u32 2102212464, %v62
    %v72 = vor.u32 %v70, %v71
    %v73 = vshll.u32 2102212464, %v61
    %v74 = vshrl.u32 920167782, %v62
    %v75 = vor.u32 %v73, %v74
    %v76 = vshll.u32 920167782, %v61
    %v77 = vshrl.u32 1326507024, %v62
    %v78 = vor.u32 %v76, %v77
    %vm79 = vcmp.lt.s32.totalorder %v60, 1
    %vm80 = vcmp.lt.s32.totalorder %v60, 2
    %vm81 = vcmp.lt.s32.totalorder %v60, 3
    %vm82 = vcmp.lt.s32.totalorder %v60, 4
    %v83 = vsel %vm79, %v63, %v66
    %v84 = vsel %vm82, %v72, 2102212464
    %v85 = vsel %vm81, %v69, %v84
    %v86 = vsel %vm80, %v83, %v85
    %v87 = vsel %vm79, %v66, %v69
    %v88 = vsel %vm82, %v75, 920167782
    %v89 = vsel %vm81, %v72, %v88
    %v90 = vsel %vm80, %v87, %v89
    %v91 = vsel %vm79, %v69, %v72
    %v92 = vsel %vm82, %v78, 1326507024
    %v93 = vsel %vm81, %v75, %v92
    %v94 = vsel %vm80, %v91, %v93
    %v95 = vshll.u32 %v55, 8
    %v96 = vmul.u32.u64.compose %v95, %v94
    %v97 = vextract.low.u32 %v96
    %v98 = vextract.high.u32 %v96
    %v99 = vmul.u32.u64.compose %v95, %v90
    %v100 = vextract.low.u32 %v99
    %v101 = vextract.high.u32 %v99
    %v102 = vmul.u32 %v95, %v86
    %v103 = vadd.s32 %v98, %v100
    %vm104 = vc.u32 %v98, %v100
    %v105 = vadd.s32 %v101, 1
    %v106 = vsel %vm104, %v105, %v101
    %v107 = vadd.s32 %v102, %v106
    %v108 = vadd.s32 %v107, 536870912
    %v109 = vshrl.u32 %v108, 30
    %v110 = vshll.u32 %v109, 30
    %v111 = vsub.s32 %v107, %v110
    %vm112 = vcmp.lt.s32.totalorder %v111, 0
    %v113 = vsub.s32 0, %v111
    %v114 = vsel %vm112, %v113, %v111
    %v115 = vclz %v114
    %v116 = vsub.s32 %v115, 2
    %vm117 = vcmp.gt.s32.totalorder 0, %v116
    %v118 = vsel %vm117, 0, %v116
    %v119 = vsub.s32 32, %v118
    %v120 = vshll.u32 %v111, %v118
    %v121 = vshrl.u32 %v103, %v119
    %v122 = vor.u32 %v120, %v121
    %v123 = vsub.s32 4294967266, %v118
    %v124 = vadd.s32 %v123, 127
    %v125 = vshll.u32 %v124, 23
    %v126 = vor.u32 4788187, %v125
    %v127 = vand.u32 2147483647, %v126
    %v129 = vcvt.s32.f32 %v122
    %v130 = vmul.f32 %v129, %v127
    %v131 = vxor.u32 %v130, 2147483648
    %v132 = vsel %vm49, %v131, %v130
    %v133 = vsub.s32 4, %v109
    %v134 = vsel %vm49, %v133, %v109
    %v135 = vsel %vm48, %v45, %v132
    %v136 = vsel %vm48, 0, %v134
    %v137 = vcosq.f32.pop %v135
    %v138 = vsinq.f32.pop %v135
    %vm139 = vweird.f32 %v45
    %v140 = vand.u32 %v136, 3
    %vm141 = vcmp.lt.s32.totalorder %v140, 2
    %vm142 = vcmp.eq.s32.totalorder %v140, 0
    %v143 = vxor.u32 %v138, 2147483648
    %v144 = vsel %vm142, %v137, %v143
    %vm145 = vcmp.eq.s32.totalorder %v140, 2
    %v146 = vxor.u32 %v137, 2147483648
    %v147 = vsel %vm145, %v146, %v138
    %v148 = vsel %vm141, %v144, %v147
    %v149 = vsel %vm139, nan, %v148
    %v150 = vand.u32 2147483647, %v46
    %vm151 = vcmp.le.f32.partialorder %v150, 0.7853982
    %vm152 = vcmp.lt.s32.totalorder %v46, 0
    %v153 = vand.u32 %v46, 2139095040
    %v154 = vshrl.u32 %v153, 23
    %v155 = vsub.s32 %v154, 127
    %v156 = vand.u32 2147483647, %v46
    %v157 = vand.u32 %v156, 8388607
    %v158 = vor.u32 %v157, 8388608
    %v159 = vsub.s32 0, %v158
    %v160 = vadd.s32 %v155, 1
    %vm161 = vcmp.gt.s32.totalorder %v160, 0
    %v162 = vsel %vm161, %v160, 0
    %v163 = vshrl.u32 %v162, 5
    %v164 = vand.u32 %v162, 31
    %v165 = vsub.s32 32, %v164
    %v166 = vshrl.u32 683565275, %v165
    %v167 = vshll.u32 683565275, %v164
    %v168 = vshrl.u32 2475754826, %v165
    %v169 = vor.u32 %v167, %v168
    %v170 = vshll.u32 2475754826, %v164
    %v171 = vshrl.u32 2131351028, %v165
    %v172 = vor.u32 %v170, %v171
    %v173 = vshll.u32 2131351028, %v164
    %v174 = vshrl.u32 2102212464, %v165
    %v175 = vor.u32 %v173, %v174
    %v176 = vshll.u32 2102212464, %v164
    %v177 = vshrl.u32 920167782, %v165
    %v178 = vor.u32 %v176, %v177
    %v179 = vshll.u32 920167782, %v164
    %v180 = vshrl.u32 1326507024, %v165
    %v181 = vor.u32 %v179, %v180
    %vm182 = vcmp.lt.s32.totalorder %v163, 1
    %vm183 = vcmp.lt.s32.totalorder %v163, 2
    %vm184 = vcmp.lt.s32.totalorder %v163, 3
    %vm185 = vcmp.lt.s32.totalorder %v163, 4
    %v186 = vsel %vm182, %v166, %v169
    %v187 = vsel %vm185, %v175, 2102212464
    %v188 = vsel %vm184, %v172, %v187
    %v189 = vsel %vm183, %v186, %v188
    %v190 = vsel %vm182, %v169, %v172
    %v191 = vsel %vm185, %v178, 920167782
    %v192 = vsel %vm184, %v175, %v191
    %v193 = vsel %vm183, %v190, %v192
    %v194 = vsel %vm182, %v172, %v175
    %v195 = vsel %vm185, %v181, 1326507024
    %v196 = vsel %vm184, %v178, %v195
    %v197 = vsel %vm183, %v194, %v196
    %v198 = vshll.u32 %v158, 8
    %v199 = vmul.u32.u64.compose %v198, %v197
    %v200 = vextract.low.u32 %v199
    %v201 = vextract.high.u32 %v199
    %v202 = vmul.u32.u64.compose %v198, %v193
    %v203 = vextract.low.u32 %v202
    %v204 = vextract.high.u32 %v202
    %v205 = vmul.u32 %v198, %v189
    %v206 = vadd.s32 %v201, %v203
    %vm207 = vc.u32 %v201, %v203
    %v208 = vadd.s32 %v204, 1
    %v209 = vsel %vm207, %v208, %v204
    %v210 = vadd.s32 %v205, %v209
    %v211 = vadd.s32 %v210, 536870912
    %v212 = vshrl.u32 %v211, 30
    %v213 = vshll.u32 %v212, 30
    %v214 = vsub.s32 %v210, %v213
    %vm215 = vcmp.lt.s32.totalorder %v214, 0
    %v216 = vsub.s32 0, %v214
    %v217 = vsel %vm215, %v216, %v214
    %v218 = vclz %v217
    %v219 = vsub.s32 %v218, 2
    %vm220 = vcmp.gt.s32.totalorder 0, %v219
    %v221 = vsel %vm220, 0, %v219
    %v222 = vsub.s32 32, %v221
    %v223 = vshll.u32 %v214, %v221
    %v224 = vshrl.u32 %v206, %v222
    %v225 = vor.u32 %v223, %v224
    %v226 = vsub.s32 4294967266, %v221
    %v227 = vadd.s32 %v226, 127
    %v228 = vshll.u32 %v227, 23
    %v229 = vor.u32 4788187, %v228
    %v230 = vand.u32 2147483647, %v229
    %v232 = vcvt.s32.f32 %v225
    %v233 = vmul.f32 %v232, %v230
    %v234 = vxor.u32 %v233, 2147483648
    %v235 = vsel %vm152, %v234, %v233
    %v236 = vsub.s32 4, %v212
    %v237 = vsel %vm152, %v236, %v212
    %v238 = vsel %vm151, %v46, %v235
    %v239 = vsel %vm151, 0, %v237
    %v240 = vcosq.f32.pop %v238
    %v241 = vsinq.f32.pop %v238
    %vm242 = vweird.f32 %v46
    %v243 = vand.u32 %v239, 3
    %vm244 = vcmp.lt.s32.totalorder %v243, 2
    %vm245 = vcmp.eq.s32.totalorder %v243, 0
    %v246 = vxor.u32 %v241, 2147483648
    %v247 = vsel %vm245, %v240, %v246
    %vm248 = vcmp.eq.s32.totalorder %v243, 2
    %v249 = vxor.u32 %v240, 2147483648
    %v250 = vsel %vm248, %v249, %v241
    %v251 = vsel %vm244, %v247, %v250
    %v252 = vsel %vm242, nan, %v251
    %v253 = vpack.c.bf16 %v149, %v149
    %v254 = vpack.c.bf16 %v252, %v252
    %v255 = vld [vmem:[%s1] sm:$0xf]
    %v256 = vld [vmem:[%s1 + $0x4] sm:$0xf]
    %v257 = vld [vmem:[%s1 + $0x8] sm:$0xf]
    %v258 = vld [vmem:[%s1 + $0xc] sm:$0xf]
    %v259 = vld [vmem:[%s1 + $0x10] sm:$0xf]
    %v260 = vld [vmem:[%s1 + $0x14] sm:$0xf]
    %v261 = vld [vmem:[%s1 + $0x18] sm:$0xf]
    %v262 = vld [vmem:[%s1 + $0x1c] sm:$0xf]
    %v263 = vld [vmem:[%s1 + $0x20] sm:$0xf]
    %v264 = vld [vmem:[%s1 + $0x24] sm:$0xf]
    %v265 = vld [vmem:[%s1 + $0x28] sm:$0xf]
    %v266 = vld [vmem:[%s1 + $0x2c] sm:$0xf]
    %v267 = vld [vmem:[%s1 + $0x30] sm:$0xf]
    %v268 = vld [vmem:[%s1 + $0x34] sm:$0xf]
    %v269 = vld [vmem:[%s1 + $0x38] sm:$0xf]
    %v270 = vld [vmem:[%s1 + $0x3c] sm:$0xf]
    %v271 = vld [vmem:[%s1 + $0x40] sm:$0xf]
    %v272 = vld [vmem:[%s1 + $0x44] sm:$0xf]
    %v273 = vld [vmem:[%s1 + $0x48] sm:$0xf]
    %v274 = vld [vmem:[%s1 + $0x4c] sm:$0xf]
    %v275 = vld [vmem:[%s1 + $0x50] sm:$0xf]
    %v276 = vld [vmem:[%s1 + $0x54] sm:$0xf]
    %v277 = vld [vmem:[%s1 + $0x58] sm:$0xf]
    %v278 = vld [vmem:[%s1 + $0x5c] sm:$0xf]
    %v279 = vld [vmem:[%s1 + $0x60] sm:$0xf]
    %v280 = vld [vmem:[%s1 + $0x64] sm:$0xf]
    %v281 = vld [vmem:[%s1 + $0x68] sm:$0xf]
    %v282 = vld [vmem:[%s1 + $0x6c] sm:$0xf]
    %v283 = vld [vmem:[%s1 + $0x70] sm:$0xf]
    %v284 = vld [vmem:[%s1 + $0x74] sm:$0xf]
    %v285 = vld [vmem:[%s1 + $0x78] sm:$0xf]
    %v286 = vld [vmem:[%s1 + $0x7c] sm:$0xf]
    %v287 = vld [vmem:[%s2] sm:$0x1]
    %v288 = vlaneseq
    %v289 = vshrl.u32 %v288, 7
    %v290 = vsub.s32 0, %v289
    %v291 = vrot.slane %v287, %v290
    %v324 = vunpack.c.l.b16 %v255
    %v325 = vunpack.c.l.b16 %v256
    %v326 = vunpack.c.l.b16 %v257
    %v327 = vunpack.c.l.b16 %v258
    %v328 = vunpack.c.l.b16 %v259
    %v329 = vunpack.c.l.b16 %v260
    %v330 = vunpack.c.l.b16 %v261
    %v331 = vunpack.c.l.b16 %v262
    %v332 = vunpack.c.l.b16 %v263
    %v333 = vunpack.c.l.b16 %v264
    %v334 = vunpack.c.l.b16 %v265
    %v335 = vunpack.c.l.b16 %v266
    %v336 = vunpack.c.l.b16 %v267
    %v337 = vunpack.c.l.b16 %v268
    %v338 = vunpack.c.l.b16 %v269
    %v339 = vunpack.c.l.b16 %v270
    %v340 = vunpack.c.l.b16 %v271
    %v341 = vunpack.c.l.b16 %v272
    %v342 = vunpack.c.l.b16 %v273
    %v343 = vunpack.c.l.b16 %v274
    %v344 = vunpack.c.l.b16 %v275
    %v345 = vunpack.c.l.b16 %v276
    %v346 = vunpack.c.l.b16 %v277
    %v347 = vunpack.c.l.b16 %v278
    %v348 = vunpack.c.l.b16 %v279
    %v349 = vunpack.c.l.b16 %v280
    %v350 = vunpack.c.l.b16 %v281
    %v351 = vunpack.c.l.b16 %v282
    %v352 = vunpack.c.l.b16 %v283
    %v353 = vunpack.c.l.b16 %v284
    %v354 = vunpack.c.l.b16 %v285
    %v355 = vunpack.c.l.b16 %v286
    %v356 = vpack.c.b16 %v325, %v324
    %v357 = vpack.c.b16 %v327, %v326
    %v358 = vpack.c.b16 %v329, %v328
    %v359 = vpack.c.b16 %v331, %v330
    %v360 = vpack.c.b16 %v333, %v332
    %v361 = vpack.c.b16 %v335, %v334
    %v362 = vpack.c.b16 %v337, %v336
    %v363 = vpack.c.b16 %v339, %v338
    %v364 = vpack.c.b16 %v341, %v340
    %v365 = vpack.c.b16 %v343, %v342
    %v366 = vpack.c.b16 %v345, %v344
    %v367 = vpack.c.b16 %v347, %v346
    %v368 = vpack.c.b16 %v349, %v348
    %v369 = vpack.c.b16 %v351, %v350
    %v370 = vpack.c.b16 %v353, %v352
    %v371 = vpack.c.b16 %v355, %v354
    %388 = vmatprep.subr.bf16.mxu0 0
    %389 = vmatpush1.bf16.msra.mxu0 %v356
    %390 = vmatprep.subr.bf16.mxu0 0
    %391 = vmatpush1.bf16.msra.mxu0 %v357
    %392 = vmatprep.subr.bf16.mxu0 0
    %393 = vmatpush1.bf16.msra.mxu0 %v358
    %394 = vmatprep.subr.bf16.mxu0 0
    %395 = vmatpush1.bf16.msra.mxu0 %v359
    %396 = vmatprep.subr.bf16.mxu0 0
    %397 = vmatpush1.bf16.msra.mxu0 %v360
    %398 = vmatprep.subr.bf16.mxu0 0
    %399 = vmatpush1.bf16.msra.mxu0 %v361
    %400 = vmatprep.subr.bf16.mxu0 0
    %401 = vmatpush1.bf16.msra.mxu0 %v362
    %402 = vmatprep.subr.bf16.mxu0 0
    %403 = vmatpush1.bf16.msra.mxu0 %v363
    %404 = vmatprep.subr.bf16.mxu0 0
    %405 = vmatpush1.bf16.msra.mxu0 %v364
    %406 = vmatprep.subr.bf16.mxu0 0
    %407 = vmatpush1.bf16.msra.mxu0 %v365
    %408 = vmatprep.subr.bf16.mxu0 0
    %409 = vmatpush1.bf16.msra.mxu0 %v366
    %410 = vmatprep.subr.bf16.mxu0 0
    %411 = vmatpush1.bf16.msra.mxu0 %v367
    %412 = vmatprep.subr.bf16.mxu0 0
    %413 = vmatpush1.bf16.msra.mxu0 %v368
    %414 = vmatprep.subr.bf16.mxu0 0
    %415 = vmatpush1.bf16.msra.mxu0 %v369
    %416 = vmatprep.subr.bf16.mxu0 0
    %417 = vmatpush1.bf16.msra.mxu0 %v370
    %418 = vmatprep.subr.bf16.mxu0 0
    %419 = vmatpush1.bf16.msra.mxu0 %v371
    %420 = vmatprep.mubr.bf16.mxu0 %v254
    %421 = vmatmul.mubr.bf16.gmra.mrb[0].mxu0 %v253
    %v422 = vpop.f32.mrb[0].mxu0
    %v423 = vadd.f32 %v291, %v422
    %v424 = vpop.f32.mrb[0].mxu0
    %v425 = vpop.f32.mrb[0].mxu0
    %v426 = vpop.f32.mrb[0].mxu0
    %427 = vdwg.mxu0
    %v428 = vxor.u32 %v423, 2147483648
    %v429 = vmul.f32 %v428, 1.442695
    %v430 = vpow.pop %v429
    %v431 = vadd.f32 %v430, 1.0
    %v432 = vrcp.pop %v431
    %v433 = vmul.f32 1.0, %v432
    %v434 = vmul.f32 %v423, %v433
    %v435 = vpack.c.bf16 %v434, %v434
    %v436 = vld [vmem:[%s3] sm:$0xf]
    %v437 = vld [vmem:[%s3 + $0x4] sm:$0xf]
    %v438 = vld [vmem:[%s3 + $0x8] sm:$0xf]
    %v439 = vld [vmem:[%s3 + $0xc] sm:$0xf]
    %v440 = vld [vmem:[%s2 + $0x1] sm:$0x1]
    %v441 = vlaneseq
    %v442 = vshrl.u32 %v441, 7
    %v443 = vsub.s32 0, %v442
    %v444 = vrot.slane %v440, %v443
    %v449 = vunpack.c.l.b16 %v436
    %v450 = vunpack.c.l.b16 %v437
    %v451 = vunpack.c.l.b16 %v438
    %v452 = vunpack.c.l.b16 %v439
    %v453 = vpack.c.b16 %v450, %v449
    %v454 = vpack.c.b16 %v452, %v451
    %vm457 = vcmask 261120
    %v459 = vsel %vm457, %v435, 0
    %461 = vmatprep.subr.bf16.mxu0 0
    %462 = vmatpush1.bf16.msra.mxu0 %v453
    %463 = vmatprep.subr.bf16.mxu0 0
    %464 = vmatpush1.bf16.msra.mxu0 %v454
    %465 = vmatprep.subr.bf16.mxu0 0
    %466 = vmatpush1.bf16.msra.mxu0 0
    %467 = vmatprep.subr.bf16.mxu0 0
    %468 = vmatpush1.bf16.msra.mxu0 0
    %469 = vmatprep.subr.bf16.mxu0 0
    %470 = vmatpush1.bf16.msra.mxu0 0
    %471 = vmatprep.subr.bf16.mxu0 0
    %472 = vmatpush1.bf16.msra.mxu0 0
    %473 = vmatprep.subr.bf16.mxu0 0
    %474 = vmatpush1.bf16.msra.mxu0 0
    %475 = vmatprep.subr.bf16.mxu0 0
    %476 = vmatpush1.bf16.msra.mxu0 0
    %477 = vmatprep.subr.bf16.mxu0 0
    %478 = vmatpush1.bf16.msra.mxu0 0
    %479 = vmatprep.subr.bf16.mxu0 0
    %480 = vmatpush1.bf16.msra.mxu0 0
    %481 = vmatprep.subr.bf16.mxu0 0
    %482 = vmatpush1.bf16.msra.mxu0 0
    %483 = vmatprep.subr.bf16.mxu0 0
    %484 = vmatpush1.bf16.msra.mxu0 0
    %485 = vmatprep.subr.bf16.mxu0 0
    %486 = vmatpush1.bf16.msra.mxu0 0
    %487 = vmatprep.subr.bf16.mxu0 0
    %488 = vmatpush1.bf16.msra.mxu0 0
    %489 = vmatprep.subr.bf16.mxu0 0
    %490 = vmatpush1.bf16.msra.mxu0 0
    %491 = vmatprep.subr.bf16.mxu0 0
    %492 = vmatpush1.bf16.msra.mxu0 0
    %493 = vmatprep.mubr.bf16.mxu0 0
    %494 = vmatmul.mubr.bf16.gmra.mrb[0].mxu0 %v459
    %v495 = vpop.f32.mrb[0].mxu0
    %v496 = vadd.f32 %v444, %v495
    %v497 = vpop.f32.mrb[0].mxu0
    %v498 = vpop.f32.mrb[0].mxu0
    %v499 = vpop.f32.mrb[0].mxu0
    %500 = vdwg.mxu0
    %501 = vst.msk [vmem:[#allocation2] sm:$0xff] %vm457, %v496
    // Predicated region
    $region18: #{tpu_custom_call.1} parent=1 // pred_check
      _
    $region19: #{tpu_custom_call.1} parent=1 // pred_check_branch
      %503 = sbr.rel (0) target = $region21
    $region20: #{tpu_custom_call.1} parent=1 // pred_region
      %s505 = ssub.s32 128, 128
      %506 = vsyncadd [#allocation3], %s505
      %s508 = sshll.u32 [#allocation2], 4
      %s509 = int_to_ptr.vmem [resolvable:$true] %s508
      %511 = dma.vmem_to_hbm [thread:$0]  %s509, 128, %s4, [#allocation3]
    $region21: #{tpu_custom_call.1} parent=1 // pred_fallthru
      _
    // Predicated region
    $region22: #{tpu_custom_call.1} parent=1 // pred_check
      _
    $region23: #{tpu_custom_call.1} parent=1 // pred_check_branch
      %513 = sbr.rel (0) target = $region25
    $region24: #{tpu_custom_call.1} parent=1 // pred_region
      %514 = dma.done [#allocation3], 128
    $region25: #{tpu_custom_call.1} parent=1 // pred_fallthru
      _
    %515 = vsyncpa [#allocation3], 1

</llo_original>
